<compile_context>
chip_gen: v6e
topology: v6e:2x2x1
jax: 0.10.0
libtpu: 0.0.40
codegen_flags: <defaults>
</compile_context>

<pallas_src>
import functools

import numpy as np
import jax
import jax.numpy as jnp
from jax import lax
from jax.experimental import pallas as pl
from jax.experimental.pallas import tpu as pltpu

_BT = 8        # batch elements per grid step (one vreg sublane group)
_LANES = 128   # lane width; N is padded to a multiple of this


def _nms_kernel(pred_ref, keep_ref, *, iou_thr):
    """Lockstep greedy NMS for Bt batch elements.

    pred_ref : (6, Bt, Np) f32 -- rows: xc, yc, w, h, score, rank
                rank = position in the per-batch stable descending-score sort
                (exact integers, Np << 2**24).
    keep_ref : (Bt, Np) i32    -- survival mask over original columns.
    Assumes Np >= 2 (the N<2 case is handled statically in the wrapper).
    """
    Bt, Np = keep_ref.shape

    xc = pred_ref[0]
    yc = pred_ref[1]
    w = pred_ref[2]
    h = pred_ref[3]
    sc = pred_ref[4]
    rank = pred_ref[5]

    # Loop-invariant geometry / masks, hoisted out of the suppression loop.
    x1 = xc - 0.5 * w
    y1 = yc - 0.5 * h
    x2 = xc + 0.5 * w
    y2 = yc + 0.5 * h
    area = (x2 - x1) * (y2 - y1)
    pos = sc > 0.0                      # non_zero_scores filter

    thr = jnp.float32(iou_thr)
    eps = jnp.float32(1e-8)
    BIG = jnp.float32(Np + 1)
    zero = jnp.float32(0.0)

    keep0 = jnp.ones((Bt, Np), jnp.float32)                 # survival mask (1.0/0.0)
    cand0 = rank                                             # eligible-future-pivot rank, else BIG
    piv0 = jnp.min(rank, axis=-1, keepdims=True)             # (Bt,1): first pivot rank (== 0)

    def cond(carry):
        _, _, piv = carry
        return jnp.min(piv) < BIG        # any batch still has an unprocessed pivot

    def body(carry):
        keep, cand, piv = carry
        frozen = piv >= BIG                                  # (Bt,1) finished batches
        sel = rank == piv                                    # exactly one lane per live batch

        # Pivot corners/area straight from masked lane-reduces over precomputed rows
        # (independent reduces -> pipelined through the XLU).
        bx1 = jnp.sum(jnp.where(sel, x1, zero), axis=-1, keepdims=True)
        by1 = jnp.sum(jnp.where(sel, y1, zero), axis=-1, keepdims=True)
        bx2 = jnp.sum(jnp.where(sel, x2, zero), axis=-1, keepdims=True)
        by2 = jnp.sum(jnp.where(sel, y2, zero), axis=-1, keepdims=True)
        ba = jnp.sum(jnp.where(sel, area, zero), axis=-1, keepdims=True)

        iw = jnp.maximum(jnp.minimum(x2, bx2) - jnp.maximum(x1, bx1), 0.0)
        ih = jnp.maximum(jnp.minimum(y2, by2) - jnp.maximum(y1, by1), 0.0)
        inter = iw * ih
        union = area + ba - inter + eps
        # Divide-free IOU test: inter/union < thr  <=>  inter < thr*union for union>0.
        # TODO(synk): assumes non-negative box areas (w,h >= 0); with negative-area
        # boxes the reference's divide form would have to be restored.
        iter_keep = ((inter < thr * union) | sel) & pos

        new_keep = jnp.where(frozen | iter_keep, keep, 0.0)  # once suppressed, stays suppressed
        # Remove the pivot and newly suppressed boxes from future-pivot candidacy.
        new_cand = jnp.where(iter_keep & (rank > piv), cand, BIG)
        # Fused next-pivot search + termination check (min == BIG <=> batch done).
        nxt = jnp.min(new_cand, axis=-1, keepdims=True)
        return new_keep, new_cand, nxt

    keep, _, _ = lax.while_loop(cond, body, (keep0, cand0, piv0))
    keep_ref[...] = keep.astype(jnp.int32)


def nms_keep_mask(predictions: jnp.ndarray, iou_threshold: float = 0.1) -> jnp.ndarray:
    """Runs the Pallas NMS kernel; returns a (B, N) int32 survival mask."""
    B, C, N = predictions.shape
    assert C == 5
    preds = predictions.astype(jnp.float32)
    if N < 2:
        # Reference keeps everything untouched when there are 0/1 detections.
        return jnp.ones((B, N), jnp.int32)
    assert N < (1 << 24)  # ranks are represented exactly in f32

    b_pad = ((B + _BT - 1) // _BT) * _BT
    n_pad = ((N + _LANES - 1) // _LANES) * _LANES
    # Zero-score padding boxes never out-rank real positive-score boxes and are
    # removed by the score>0 filter, so they cannot affect real results.
    preds_p = jnp.pad(preds, ((0, b_pad - B), (0, 0), (0, n_pad - N)))

    scores = preds_p[:, 4, :]
    order = jnp.argsort(-scores, axis=-1)                  # stable: ties -> lower index
    rank = jnp.argsort(order, axis=-1).astype(jnp.float32)  # inverse perm = sort position
    stacked = jnp.concatenate([preds_p, rank[:, None, :]], axis=1)   # (b_pad, 6, n_pad)
    stacked = jnp.transpose(stacked, (1, 0, 2))                      # (6, b_pad, n_pad)

    grid_b = b_pad // _BT

    # VMEM budget: double-buffered (6,Bt,Np) input + (Bt,Np) output + ~24 loop-live rows.
    # TODO(synk): for very large N (~>5e5) chunk the IOU/keep update over lane tiles to
    # stay within v7x's 64 MiB VMEM and the 64-vreg file instead of single full-width rows.
    vmem_bytes = int((2 * 6 + 2 + 24) * _BT * n_pad * 4 + (1 << 20))
    vmem_bytes = max(min(vmem_bytes, 48 << 20), 4 << 20)

    keep = pl.pallas_call(
        functools.partial(_nms_kernel, iou_thr=float(iou_threshold)),
        out_shape=jax.ShapeDtypeStruct((b_pad, n_pad), jnp.int32),
        grid_spec=pltpu.PrefetchScalarGridSpec(
            num_scalar_prefetch=0,
            grid=(grid_b,),
            in_specs=[pl.BlockSpec((6, _BT, n_pad), lambda b: (0, b, 0))],
            out_specs=pl.BlockSpec((_BT, n_pad), lambda b: (b, 0)),
        ),
        # "parallel" batch axis: with Bt=8, B >= 16 gives a grid >= 2 so both v7x
        # TensorCores are fed; no-op on single-TC v5e/v6e.
        compiler_params=pltpu.CompilerParams(
            dimension_semantics=("parallel",),
            vmem_limit_bytes=vmem_bytes,
        ),
    )(stacked)
    return keep[:B, :N]


def _pack_left(preds: jnp.ndarray, keep: jnp.ndarray):
    """On-device left-compaction of surviving columns (original order preserved)."""
    B, _, N = preds.shape
    keep_b = keep > 0
    counts = jnp.sum(keep_b.astype(jnp.int32), axis=1)            # (B,)
    pos = jnp.cumsum(keep_b.astype(jnp.int32), axis=1) - 1        # target column
    pos = jnp.where(keep_b, pos, N)                               # dead boxes -> overflow slot
    vals = jnp.where(keep_b[:, None, :], preds, 0.0)              # (B, 5, N)
    vals = jnp.transpose(vals, (0, 2, 1))                         # (B, N, 5)
    out = jnp.zeros((B, N + 1, 5), preds.dtype)
    bidx = jnp.arange(B)[:, None]
    out = out.at[bidx, pos].set(vals)
    packed = jnp.transpose(out[:, :N, :], (0, 2, 1))              # (B, 5, N) zero-padded
    return packed, counts


@functools.partial(jax.jit, static_argnums=(1,))
def _nms_device(predictions, iou_threshold):
    preds = predictions.astype(jnp.float32)
    keep = nms_keep_mask(preds, iou_threshold)
    packed, counts = _pack_left(preds, keep)
    return packed, counts


def nms_forward(predictions: jnp.ndarray, iou_threshold: float = 0.1) -> np.ndarray:
    packed, counts = _nms_device(predictions, float(iou_threshold))
    packed, counts = jax.block_until_ready((packed, counts))
    counts_np = np.asarray(counts)
    max_det = int(counts_np.max()) if counts_np.size else 0
    # TODO(synk): the data-dependent output width (max detections across batches) cannot
    # be a fixed-shape device result; only this final truncation stays host-side.
    return np.asarray(packed)[:, :, :max_det]


# ----------------------------- pure NumPy reference -----------------------------
def _calc_iou_ref(p, best):
    xc, yc, w, h = p[0, :], p[1, :], p[2, :], p[3, :]
    xt, yt, wt, ht = best[0, :], best[1, :], best[2, :], best[3, :]
    x1p, y1p, x2p, y2p = xc - w / 2, yc - h / 2, xc + w / 2, yc + h / 2
    x1t, y1t, x2t, y2t = xt - wt / 2, yt - ht / 2, xt + wt / 2, yt + ht / 2
    ix1 = np.maximum(x1p[:, None], x1t)
    iy1 = np.maximum(y1p[:, None], y1t)
    ix2 = np.minimum(x2p[:, None], x2t)
    iy2 = np.minimum(y2p[:, None], y2t)
    inter = np.clip(ix2 - ix1, 0, None) * np.clip(iy2 - iy1, 0, None)
    pa = (x2p - x1p) * (y2p - y1p)
    ta = (x2t - x1t) * (y2t - y1t)
    union = pa[:, None] + ta - inter
    return inter / (union + 1e-8)


def nms_reference(preds_np: np.ndarray, thr: float = 0.1) -> np.ndarray:
    outs = []
    for b in range(preds_np.shape[0]):
        p = preds_np[b].astype(np.float32).copy()
        eof, index = False, 0
        while not eof:
            n = p.shape[1]
            if n == 0:
                index += 1
                if index >= n:
                    eof = True
                continue
            order = np.argsort(-p[4, :], kind="stable")
            if n == 1:
                index += 1
                if index >= n:
                    eof = True
                continue
            sel = order[index]
            ious = _calc_iou_ref(p, p[0:4, sel:sel + 1])
            keep = ious[:, 0] < thr
            keep[sel] = True
            keep = keep & (p[4, :] > 0)
            p = p[:, keep]
            index += 1
            if index >= p.shape[1]:
                eof = True
        outs.append(p)
    max_det = max((o.shape[1] for o in outs), default=0)
    res = np.zeros((len(outs), 5, max_det), np.float32)
    for i, o in enumerate(outs):
        res[i, :, : o.shape[1]] = o
    return res


if __name__ == "__main__":
    B, N = 8, 128
    key = jax.random.PRNGKey(0)
    k1, k2, k3 = jax.random.split(key, 3)
    xy = jax.random.uniform(k1, (B, 2, N), minval=0.0, maxval=100.0)
    wh = jax.random.uniform(k2, (B, 2, N), minval=2.0, maxval=30.0)
    sc = jax.random.uniform(k3, (B, 1, N), minval=0.05, maxval=1.0)
    sc = sc.at[:, :, :4].set(0.0)   # a few zero-score boxes exercise the score>0 filter
    preds = jnp.concatenate([xy, wh, sc], axis=1).astype(jnp.float32)   # (B, 5, N)

    out = nms_forward(preds, 0.1)
    ref = nms_reference(np.asarray(preds), 0.1)
    assert out.shape == ref.shape, (out.shape, ref.shape)
    assert np.allclose(out, ref, atol=1e-4), "Pallas NMS result mismatch vs reference"

    # Second case exercises the batch (2 -> 8) and lane (100 -> 128) padding paths.
    preds2 = preds[:2, :, :100]
    out2 = nms_forward(preds2, 0.1)
    ref2 = nms_reference(np.asarray(preds2), 0.1)
    assert out2.shape == ref2.shape, (out2.shape, ref2.shape)
    assert np.allclose(out2, ref2, atol=1e-4), "Pallas NMS padded-case mismatch vs reference"

    print("KERNEL_OK")
</pallas_src>

<mosaic_0001>
module attributes {stable_mosaic.version = 11 : i64} {
  func.func @_nms_kernel(%arg0: i32, %arg1: memref<6x8x128xf32, #tpu.memory_space<vmem>>, %arg2: memref<8x128xi32, #tpu.memory_space<vmem>>) attributes {dimension_semantics = [#tpu.dimension_semantics<parallel>], iteration_bounds = array<i64: 1>, scalar_prefetch = 0 : i64, scratch_operands = 0 : i64, tpu.core_type = #tpu.core_type<tc>, window_params = [{transform_indices = @transform_0, window_bounds = array<i64: 6, 8, 128>}, {transform_indices = @transform_1, window_bounds = array<i64: 8, 128>}]} {
    %c0 = arith.constant 0 : index
    %c0_0 = arith.constant 0 : index
    %c0_1 = arith.constant 0 : index
    %0 = vector.load %arg1[%c0, %c0_0, %c0_1] : memref<6x8x128xf32, #tpu.memory_space<vmem>>, vector<1x8x128xf32>
    %1 = vector.shape_cast %0 : vector<1x8x128xf32> to vector<8x128xf32>
    %c1 = arith.constant 1 : index
    %c0_2 = arith.constant 0 : index
    %c0_3 = arith.constant 0 : index
    %2 = vector.load %arg1[%c1, %c0_2, %c0_3] : memref<6x8x128xf32, #tpu.memory_space<vmem>>, vector<1x8x128xf32>
    %3 = vector.shape_cast %2 : vector<1x8x128xf32> to vector<8x128xf32>
    %c2 = arith.constant 2 : index
    %c0_4 = arith.constant 0 : index
    %c0_5 = arith.constant 0 : index
    %4 = vector.load %arg1[%c2, %c0_4, %c0_5] : memref<6x8x128xf32, #tpu.memory_space<vmem>>, vector<1x8x128xf32>
    %5 = vector.shape_cast %4 : vector<1x8x128xf32> to vector<8x128xf32>
    %c3 = arith.constant 3 : index
    %c0_6 = arith.constant 0 : index
    %c0_7 = arith.constant 0 : index
    %6 = vector.load %arg1[%c3, %c0_6, %c0_7] : memref<6x8x128xf32, #tpu.memory_space<vmem>>, vector<1x8x128xf32>
    %7 = vector.shape_cast %6 : vector<1x8x128xf32> to vector<8x128xf32>
    %c4 = arith.constant 4 : index
    %c0_8 = arith.constant 0 : index
    %c0_9 = arith.constant 0 : index
    %8 = vector.load %arg1[%c4, %c0_8, %c0_9] : memref<6x8x128xf32, #tpu.memory_space<vmem>>, vector<1x8x128xf32>
    %9 = vector.shape_cast %8 : vector<1x8x128xf32> to vector<8x128xf32>
    %c5 = arith.constant 5 : index
    %c0_10 = arith.constant 0 : index
    %c0_11 = arith.constant 0 : index
    %10 = vector.load %arg1[%c5, %c0_10, %c0_11] : memref<6x8x128xf32, #tpu.memory_space<vmem>>, vector<1x8x128xf32>
    %11 = vector.shape_cast %10 : vector<1x8x128xf32> to vector<8x128xf32>
    %cst = arith.constant 5.000000e-01 : f32
    %12 = vector.broadcast %cst : f32 to vector<8x128xf32>
    %13 = arith.mulf %12, %5 : vector<8x128xf32>
    %14 = arith.subf %1, %13 : vector<8x128xf32>
    %cst_12 = arith.constant 5.000000e-01 : f32
    %15 = vector.broadcast %cst_12 : f32 to vector<8x128xf32>
    %16 = arith.mulf %15, %7 : vector<8x128xf32>
    %17 = arith.subf %3, %16 : vector<8x128xf32>
    %cst_13 = arith.constant 5.000000e-01 : f32
    %18 = vector.broadcast %cst_13 : f32 to vector<8x128xf32>
    %19 = arith.mulf %18, %5 : vector<8x128xf32>
    %20 = arith.addf %1, %19 : vector<8x128xf32>
    %cst_14 = arith.constant 5.000000e-01 : f32
    %21 = vector.broadcast %cst_14 : f32 to vector<8x128xf32>
    %22 = arith.mulf %21, %7 : vector<8x128xf32>
    %23 = arith.addf %3, %22 : vector<8x128xf32>
    %24 = arith.subf %20, %14 : vector<8x128xf32>
    %25 = arith.subf %23, %17 : vector<8x128xf32>
    %26 = arith.mulf %24, %25 : vector<8x128xf32>
    %cst_15 = arith.constant 0.000000e+00 : f32
    %27 = vector.broadcast %cst_15 : f32 to vector<8x128xf32>
    %28 = arith.cmpf ogt, %9, %27 : vector<8x128xf32>
    %cst_16 = arith.constant 1.000000e+00 : f32
    %29 = vector.broadcast %cst_16 : f32 to vector<8x128xf32>
    %cst_17 = arith.constant dense<0x7F800000> : vector<8xf32>
    %30 = vector.multi_reduction <minimumf>, %11, %cst_17 [1] : vector<8x128xf32> to vector<8xf32>
    %31 = vector.shape_cast %30 : vector<8xf32> to vector<8x1xf32>
    %cst_18 = arith.constant 1.290000e+02 : f32
    %cst_19 = arith.constant 1.290000e+02 : f32
    %cst_20 = arith.constant 0.000000e+00 : f32
    %cst_21 = arith.constant 9.99999993E-9 : f32
    %cst_22 = arith.constant 1.000000e-01 : f32
    %32:3 = scf.while (%arg3 = %29, %arg4 = %11, %arg5 = %31) : (vector<8x128xf32>, vector<8x128xf32>, vector<8x1xf32>) -> (vector<8x128xf32>, vector<8x128xf32>, vector<8x1xf32>) {
      %35 = vector.shape_cast %arg5 : vector<8x1xf32> to vector<1x8x1xf32>
      %cst_25 = arith.constant dense<0x7F800000> : vector<1xf32>
      %36 = vector.multi_reduction <minimumf>, %35, %cst_25 [1, 2] : vector<1x8x1xf32> to vector<1xf32>
      %37 = vector.shape_cast %36 : vector<1xf32> to vector<1x1x1xf32>
      %38 = vector.extract %37[0, 0, 0] : f32 from vector<1x1x1xf32>
      %39 = arith.cmpf olt, %38, %cst_18 : f32
      scf.condition(%39) %arg3, %arg4, %arg5 : vector<8x128xf32>, vector<8x128xf32>, vector<8x1xf32>
    } do {
    ^bb0(%arg3: vector<8x128xf32>, %arg4: vector<8x128xf32>, %arg5: vector<8x1xf32>):
      %35 = vector.broadcast %cst_19 : f32 to vector<8x1xf32>
      %36 = arith.cmpf oge, %arg5, %35 : vector<8x1xf32>
      %37 = vector.broadcast %arg5 : vector<8x1xf32> to vector<8x128xf32>
      %38 = arith.cmpf oeq, %11, %37 : vector<8x128xf32>
      %39 = vector.broadcast %cst_20 : f32 to vector<8x128xf32>
      %40 = arith.select %38, %14, %39 : vector<8x128xi1>, vector<8x128xf32>
      %cst_25 = arith.constant dense<0.000000e+00> : vector<8xf32>
      %41 = vector.multi_reduction <add>, %40, %cst_25 [1] : vector<8x128xf32> to vector<8xf32>
      %42 = vector.shape_cast %41 : vector<8xf32> to vector<8x1xf32>
      %43 = vector.broadcast %cst_20 : f32 to vector<8x128xf32>
      %44 = arith.select %38, %17, %43 : vector<8x128xi1>, vector<8x128xf32>
      %cst_26 = arith.constant dense<0.000000e+00> : vector<8xf32>
      %45 = vector.multi_reduction <add>, %44, %cst_26 [1] : vector<8x128xf32> to vector<8xf32>
      %46 = vector.shape_cast %45 : vector<8xf32> to vector<8x1xf32>
      %47 = vector.broadcast %cst_20 : f32 to vector<8x128xf32>
      %48 = arith.select %38, %20, %47 : vector<8x128xi1>, vector<8x128xf32>
      %cst_27 = arith.constant dense<0.000000e+00> : vector<8xf32>
      %49 = vector.multi_reduction <add>, %48, %cst_27 [1] : vector<8x128xf32> to vector<8xf32>
      %50 = vector.shape_cast %49 : vector<8xf32> to vector<8x1xf32>
      %51 = vector.broadcast %cst_20 : f32 to vector<8x128xf32>
      %52 = arith.select %38, %23, %51 : vector<8x128xi1>, vector<8x128xf32>
      %cst_28 = arith.constant dense<0.000000e+00> : vector<8xf32>
      %53 = vector.multi_reduction <add>, %52, %cst_28 [1] : vector<8x128xf32> to vector<8xf32>
      %54 = vector.shape_cast %53 : vector<8xf32> to vector<8x1xf32>
      %55 = vector.broadcast %cst_20 : f32 to vector<8x128xf32>
      %56 = arith.select %38, %26, %55 : vector<8x128xi1>, vector<8x128xf32>
      %cst_29 = arith.constant dense<0.000000e+00> : vector<8xf32>
      %57 = vector.multi_reduction <add>, %56, %cst_29 [1] : vector<8x128xf32> to vector<8xf32>
      %58 = vector.shape_cast %57 : vector<8xf32> to vector<8x1xf32>
      %59 = vector.broadcast %50 : vector<8x1xf32> to vector<8x128xf32>
      %60 = arith.minimumf %20, %59 : vector<8x128xf32>
      %61 = vector.broadcast %42 : vector<8x1xf32> to vector<8x128xf32>
      %62 = arith.maximumf %14, %61 : vector<8x128xf32>
      %63 = arith.subf %60, %62 : vector<8x128xf32>
      %cst_30 = arith.constant 0.000000e+00 : f32
      %64 = vector.broadcast %cst_30 : f32 to vector<8x128xf32>
      %65 = arith.maximumf %63, %64 : vector<8x128xf32>
      %66 = vector.broadcast %54 : vector<8x1xf32> to vector<8x128xf32>
      %67 = arith.minimumf %23, %66 : vector<8x128xf32>
      %68 = vector.broadcast %46 : vector<8x1xf32> to vector<8x128xf32>
      %69 = arith.maximumf %17, %68 : vector<8x128xf32>
      %70 = arith.subf %67, %69 : vector<8x128xf32>
      %cst_31 = arith.constant 0.000000e+00 : f32
      %71 = vector.broadcast %cst_31 : f32 to vector<8x128xf32>
      %72 = arith.maximumf %70, %71 : vector<8x128xf32>
      %73 = arith.mulf %65, %72 : vector<8x128xf32>
      %74 = vector.broadcast %58 : vector<8x1xf32> to vector<8x128xf32>
      %75 = arith.addf %26, %74 : vector<8x128xf32>
      %76 = arith.subf %75, %73 : vector<8x128xf32>
      %77 = vector.broadcast %cst_21 : f32 to vector<8x128xf32>
      %78 = arith.addf %76, %77 : vector<8x128xf32>
      %79 = vector.broadcast %cst_22 : f32 to vector<8x128xf32>
      %80 = arith.mulf %79, %78 : vector<8x128xf32>
      %81 = arith.cmpf olt, %73, %80 : vector<8x128xf32>
      %82 = arith.ori %81, %38 : vector<8x128xi1>
      %83 = arith.andi %82, %28 : vector<8x128xi1>
      %84 = vector.broadcast %36 : vector<8x1xi1> to vector<8x128xi1>
      %85 = arith.ori %84, %83 : vector<8x128xi1>
      %cst_32 = arith.constant 0.000000e+00 : f32
      %86 = vector.broadcast %cst_32 : f32 to vector<8x128xf32>
      %87 = arith.select %85, %arg3, %86 : vector<8x128xi1>, vector<8x128xf32>
      %88 = vector.broadcast %arg5 : vector<8x1xf32> to vector<8x128xf32>
      %89 = arith.cmpf ogt, %11, %88 : vector<8x128xf32>
      %90 = arith.andi %83, %89 : vector<8x128xi1>
      %91 = vector.broadcast %cst_19 : f32 to vector<8x128xf32>
      %92 = arith.select %90, %arg4, %91 : vector<8x128xi1>, vector<8x128xf32>
      %cst_33 = arith.constant dense<0x7F800000> : vector<8xf32>
      %93 = vector.multi_reduction <minimumf>, %92, %cst_33 [1] : vector<8x128xf32> to vector<8xf32>
      %94 = vector.shape_cast %93 : vector<8xf32> to vector<8x1xf32>
      scf.yield %87, %92, %94 : vector<8x128xf32>, vector<8x128xf32>, vector<8x1xf32>
    }
    %33 = arith.fptosi %32#0 : vector<8x128xf32> to vector<8x128xi32>
    %c0_23 = arith.constant 0 : index
    %c0_24 = arith.constant 0 : index
    %34 = vector.load %arg2[%c0_23, %c0_24] : memref<8x128xi32, #tpu.memory_space<vmem>>, vector<8x128xi32>
    tpu.vector_store %arg2[%c0_23, %c0_24], %33 {strides = array<i32>} : memref<8x128xi32, #tpu.memory_space<vmem>>, vector<8x128xi32>,
    return
  }
  func.func @transform_0(%arg0: i32) -> (i32, i32, i32) {
    %c0_i32 = arith.constant 0 : i32
    %c0_i32_0 = arith.constant 0 : i32
    %c0_i32_1 = arith.constant 0 : i32
    return %c0_i32, %arg0, %c0_i32_0 : i32, i32, i32
  }
  func.func @transform_1(%arg0: i32) -> (i32, i32) {
    %c0_i32 = arith.constant 0 : i32
    %c0_i32_0 = arith.constant 0 : i32
    return %arg0, %c0_i32 : i32, i32
  }
}

</mosaic_0001>

<llo_original>
// kernel: _nms_device.1
$region0: #{_nms_device.1}
  #allocation0 [shape = 'u32[]', space=smem, size = 0x4, offset = 0x4, fixed_abs, tag = 'smem constant byte address 0x4 - core index']
  #allocation1 [shape = 'u32[144,128]{1,0:T(1,128)}', space=vmem, size = 0x12000, scoped, tag = 'internal scratch']
  %s0 = inlined_call_operand.vmem [shape: f32[6,8,128], index: 0, kind: input, shape index: {}]
  %s1 = inlined_call_operand.vmem [shape: s32[8,128], index: 1, kind: output, shape index: {}]
  %s2 = sld [smem:[#allocation0]]
  $region21: #{_nms_device.1} parent=0
    _
  %s4 = ssub.s32 1, %s2
  %s5 = scalar_select 0, %s4, %s2
  // Predicated region
  $region2: #{_nms_device.1} parent=0 // pred_check
    _
  $region3: #{_nms_device.1} parent=0 // pred_check_branch
    %7 = sbr.rel (0) target = $region5
  $region4: #{_nms_device.1} parent=0 // pred_region
    _
  $region5: #{_nms_device.1} parent=0 // pred_fallthru
    _
  %v8 = vld [vmem:[%s0] sm:$0xff]
  %s9 = scalar_lea.vmem %s0, 8
  %v10 = vld [vmem:[%s9] sm:$0xff]
  %s11 = scalar_lea.vmem %s0, 16
  %v12 = vld [vmem:[%s11] sm:$0xff]
  %s13 = scalar_lea.vmem %s0, 24
  %v14 = vld [vmem:[%s13] sm:$0xff]
  %s15 = scalar_lea.vmem %s0, 32
  %v16 = vld [vmem:[%s15] sm:$0xff]
  %s17 = scalar_lea.vmem %s0, 40
  %v18 = vld [vmem:[%s17] sm:$0xff]
  %v19 = vmul.f32 %v12, 0.5
  %v20 = vsub.f32 %v8, %v19
  %v21 = vmul.f32 %v14, 0.5
  %v22 = vsub.f32 %v10, %v21
  %v23 = vadd.f32 %v8, %v19
  %v24 = vadd.f32 %v10, %v21
  %v25 = vsub.f32 %v23, %v20
  %v26 = vsub.f32 %v24, %v22
  %v27 = vmul.f32 %v25, %v26
  %vm28 = vcmp.gt.f32.partialorder %v16, 0.0
  %29 = vmin.xlane.f32.xlu0 %v18
  %v30 = vpop.xlane.xlu0 %29
  // While loop
  $region6: #{_nms_device.1} parent=0 // loop_pre_header
    _
  $region7: #{_nms_device.1} parent=0 // loop_header
    %v32 = vphi 1.0, %v82
    %v33 = vphi %v18, %v85
    %v34 = vphi %v30, %v87
    %v35 = vrot.slane %v34, 4
    %v36 = vmin.f32 %v34, %v35
    %v37 = vrot.slane %v36, 2
    %v38 = vmin.f32 %v36, %v37
    %v39 = vrot.slane %v38, 1
    %v40 = vmin.f32 %v38, %v39
    %s41 = vtos %v40
    %p42 = scmp.lt.f32.partialorder %s41, 129.0
    %p43 = pneg %p42
  $region8: #{_nms_device.1} parent=0 // loop_header_branch
    %45 = sbr.rel (%p43) target = $region12
  $region9: #{_nms_device.1} parent=0 // loop_body
    %vm46 = vcmp.ge.f32.partialorder %v34, 129.0
    %vm47 = vcmp.eq.f32.partialorder %v18, %v34
    %v48 = vsel %vm47, %v20, 0.0
    %49 = vadd.xlane.f32.xlu0 %v48
    %v50 = vpop.xlane.xlu0 %49
    %v51 = vsel %vm47, %v22, 0.0
    %52 = vadd.xlane.f32.xlu0 %v51
    %v53 = vpop.xlane.xlu0 %52
    %v54 = vsel %vm47, %v23, 0.0
    %55 = vadd.xlane.f32.xlu0 %v54
    %v56 = vpop.xlane.xlu0 %55
    %v57 = vsel %vm47, %v24, 0.0
    %58 = vadd.xlane.f32.xlu0 %v57
    %v59 = vpop.xlane.xlu0 %58
    %v60 = vsel %vm47, %v27, 0.0
    %61 = vadd.xlane.f32.xlu0 %v60
    %v62 = vpop.xlane.xlu0 %61
    %v63 = vmin.f32 %v23, %v56
    %v64 = vmax.f32 %v20, %v50
    %v65 = vsub.f32 %v63, %v64
    %v66 = vmax.f32 %v65, 0.0
    %v67 = vmin.f32 %v24, %v59
    %v68 = vmax.f32 %v22, %v53
    %v69 = vsub.f32 %v67, %v68
    %v70 = vmax.f32 %v69, 0.0
    %v71 = vmul.f32 %v66, %v70
    %v72 = vadd.f32 %v27, %v62
    %v73 = vsub.f32 %v72, %v71
    %v74 = vadd.f32 %v73, 1e-08
    %v75 = vmul.f32 %v74, 0.1
    %vm76 = vcmp.lt.f32.partialorder %v71, %v75
    %vm77 = vmor %vm76, %vm47
    %vm78 = vmand %vm77, %vm28
    %v79 = vsel %vm46, 1, 0
    %vm80 = vcmp.eq.s32.totalorder %v79, 1
    %vm81 = vmor %vm80, %vm78
    %v82 = vsel %vm81, %v32, 0.0
    %vm83 = vcmp.gt.f32.partialorder %v18, %v34
    %vm84 = vmand %vm78, %vm83
    %v85 = vsel %vm84, %v33, 129.0
    %86 = vmin.xlane.f32.xlu0 %v85
    %v87 = vpop.xlane.xlu0 %86
  $region10: #{_nms_device.1} parent=0 // loop_footer
    _
  $region11: #{_nms_device.1} parent=0 // loop_footer_branch
    %31 = sbr.rel target = $region7
  $region12: #{_nms_device.1} parent=0 // loop_exit
    _
  %v88 = vcvt.f32.s32.to.zero.pseudo %v32
  %89 = vst [vmem:[%s1] sm:$0xff] %v88
  // Predicated region
  $region13: #{_nms_device.1} parent=0 // pred_check
    _
  $region14: #{_nms_device.1} parent=0 // pred_check_branch
    %91 = sbr.rel (0) target = $region16
  $region15: #{_nms_device.1} parent=0 // pred_region
    _
  $region16: #{_nms_device.1} parent=0 // pred_fallthru
    _
  // Predicated region
  $region17: #{_nms_device.1} parent=0 // pred_check
    _
  $region18: #{_nms_device.1} parent=0 // pred_check_branch
    %93 = sbr.rel (0) target = $region20
  $region19: #{_nms_device.1} parent=0 // pred_region
    _
  $region20: #{_nms_device.1} parent=0 // pred_fallthru
    _

</llo_original>
